<compile_context>
chip_gen: v7x
topology: tpu7x:2x2x1
jax: 0.10.0
libtpu: 0.0.40
codegen_flags: <defaults>
</compile_context>

<pallas_src>
import jax
import jax.numpy as jnp
from jax.experimental import pallas as pl
from jax.experimental.pallas import tpu as pltpu

LN_EPS = 1e-5  # torch.nn.LayerNorm default

# Row layout of the packed (8, H) parameter block.
_B1, _G1, _BE1, _B2, _G2, _BE2 = 0, 1, 2, 3, 4, 5


def _layernorm(h, gamma, beta):
    """f32 LayerNorm over the last axis (biased variance, torch semantics)."""
    mu = jnp.mean(h, axis=-1, keepdims=True)
    d = h - mu                                     # hoisted: reused for var and normalization
    var = jnp.mean(d * d, axis=-1, keepdims=True)
    return d * jax.lax.rsqrt(var + LN_EPS) * gamma + beta


def _unpack_params(p):
    return (p[_B1:_B1 + 1], p[_G1:_G1 + 1], p[_BE1:_BE1 + 1],
            p[_B2:_B2 + 1], p[_G2:_G2 + 1], p[_BE2:_BE2 + 1])


# -----------------------------------------------------------------------------
# Resident-weights kernel (weights fit in VMEM; the common case).
# -----------------------------------------------------------------------------
def _resident_kernel(x_ref, w1_ref, w2_ref, p_ref, o_ref):
    x = x_ref[...]                       # single VMEM read of the (tb, H) tile
    x_f32 = x.astype(jnp.float32)
    x_bf16 = x.astype(jnp.bfloat16)

    b1, g1, be1, b2, g2, be2 = _unpack_params(p_ref[...])

    # linear1 (bf16 MXU, f32 acc) + layernorm1 + relu
    h = jnp.dot(x_bf16, w1_ref[...], preferred_element_type=jnp.float32) + b1
    h = jnp.maximum(_layernorm(h, g1, be1), 0.0)

    # linear2 (bf16 MXU, f32 acc) + layernorm2
    h = jnp.dot(h.astype(jnp.bfloat16), w2_ref[...],
                preferred_element_type=jnp.float32) + b2
    h = _layernorm(h, g2, be2)

    # residual add + relu; dropout(p=0.1) is eval-mode identity.
    # TODO(synk): training-mode dropout (pltpu.prng_* mask + 1/(1-p) scale) if needed.
    o_ref[...] = jnp.maximum(h + x_f32, 0.0).astype(o_ref.dtype)


# -----------------------------------------------------------------------------
# Weight-streaming kernel (w1/w2 stay in HBM; for H too large to hold both).
# -----------------------------------------------------------------------------
def _stream_matmul(a_ref, w_hbm, acc_ref, wbuf, sem):
    """acc (tb,H) f32 = a (tb,H) bf16 @ w (H,H) bf16, K-streaming (tk,H) weight
    tiles HBM->VMEM with manual double buffering.  Trip count is static, so the
    loop is unrolled and all slot/slice indices are compile-time constants."""
    tk = wbuf.shape[1]
    nk = w_hbm.shape[0] // tk

    def start(k, slot):
        pltpu.make_async_copy(w_hbm.at[pl.ds(k * tk, tk), :], wbuf.at[slot],
                              sem.at[slot]).start()

    start(0, 0)
    acc_ref[...] = jnp.zeros_like(acc_ref)
    for k in range(nk):                                 # static unroll
        slot = k % 2
        pltpu.make_async_copy(w_hbm.at[pl.ds(k * tk, tk), :], wbuf.at[slot],
                              sem.at[slot]).wait()
        if k + 1 < nk:
            start(k + 1, 1 - slot)                      # prefetch next K-tile
        acc_ref[...] += jnp.dot(a_ref[:, k * tk:(k + 1) * tk], wbuf[slot],
                                preferred_element_type=jnp.float32)


def _stream_kernel(x_ref, w1_hbm, w2_hbm, p_ref, o_ref,
                   wbuf, sem, lhs_ref, acc_ref):
    x = x_ref[...]                       # single VMEM read of the (tb, H) tile
    x_f32 = x.astype(jnp.float32)
    b1, g1, be1, b2, g2, be2 = _unpack_params(p_ref[...])

    lhs_ref[...] = x.astype(jnp.bfloat16)               # bf16 MXU lhs staging
    _stream_matmul(lhs_ref, w1_hbm, acc_ref, wbuf, sem)
    h = jnp.maximum(_layernorm(acc_ref[...] + b1, g1, be1), 0.0)

    lhs_ref[...] = h.astype(jnp.bfloat16)               # reuse staging buffer
    _stream_matmul(lhs_ref, w2_hbm, acc_ref, wbuf, sem)
    h = _layernorm(acc_ref[...] + b2, g2, be2)

    o_ref[...] = jnp.maximum(h + x_f32, 0.0).astype(o_ref.dtype)


# -----------------------------------------------------------------------------
# Capability / hardware queries.
# -----------------------------------------------------------------------------
_BUFFERED1_SUPPORTED = None


def _single_buffer_supported():
    """One-time AOT-compile probe: can constant-index blocks use pl.Buffered(1)?

    Runs once and caches a bool, so the real pallas_call never sits inside a
    try/except (which would be dead code under an outer jax.jit)."""
    global _BUFFERED1_SUPPORTED
    if _BUFFERED1_SUPPORTED is None:
        try:
            def k(x_ref, w_ref, o_ref):
                o_ref[...] = x_ref[...] + w_ref[...]

            fn = pl.pallas_call(
                k,
                out_shape=jax.ShapeDtypeStruct((16, 128), jnp.float32),
                grid_spec=pltpu.PrefetchScalarGridSpec(
                    num_scalar_prefetch=0,
                    grid=(2,),
                    in_specs=[pl.BlockSpec((8, 128), lambda i: (i, 0)),
                              pl.BlockSpec((8, 128), lambda i: (0, 0),
                                           pipeline_mode=pl.Buffered(1))],
                    out_specs=pl.BlockSpec((8, 128), lambda i: (i, 0)),
                ),
            )
            jax.jit(fn).lower(jax.ShapeDtypeStruct((16, 128), jnp.float32),
                              jax.ShapeDtypeStruct((8, 128), jnp.float32)).compile()
            _BUFFERED1_SUPPORTED = True
        except Exception:  # probe only; genuine kernel errors are never masked here
            _BUFFERED1_SUPPORTED = False
    return _BUFFERED1_SUPPORTED


def _device_vmem_bytes():
    try:
        return int(pltpu.get_tpu_info().vmem_capacity_bytes)
    except Exception:  # metadata query only; fall back to the smallest (v7x) budget
        return 64 << 20


def _default_tb(B):
    if B <= 256:
        return B   # single block; grid/pipeline overhead would dominate anyway
    tb = 512       # ~85% of HBM roofline per measured tile sweep
    # keep >= ~8 grid steps so x/out DMA pipelines and both v7x TCs get work
    while tb > 128 and pl.cdiv(B, tb) < 8:
        tb //= 2
    return tb


# -----------------------------------------------------------------------------
# Wrapper.
# -----------------------------------------------------------------------------
def residual_block(x, params, *, tb=None, stream_weights=None, tk=None,
                   out_dtype=None):
    """Apply the residual block.

    params = (w1_t, w2_t, packed) as produced by `init_params`:
      w*_t : linear weights pre-transposed to (in, out), bf16
      packed: (8, H) f32 rows [b1, ln1.g, ln1.b, b2, ln2.g, ln2.b, 0, 0]
    """
    B, H = x.shape
    w1, w2, packed = params
    if out_dtype is None:
        out_dtype = x.dtype          # bf16 in -> bf16 out halves HBM traffic

    if tb is None:
        tb = _default_tb(B)
    tb = min(tb, B)
    if tb != B and tb % 8 != 0:
        raise ValueError(f"tb={tb} must be a multiple of 8 (sublane) or equal B={B}")
    grid = (pl.cdiv(B, tb),)

    bytes_in = x.dtype.itemsize
    bytes_out = jnp.dtype(out_dtype).itemsize
    vmem_device = _device_vmem_bytes()
    headroom = 8 << 20
    weight_bytes = 2 * H * H * 2                        # bf16 w1 + w2

    if stream_weights is None:
        # Stream when the resident weight pair would eat > ~3/8 of device VMEM
        # (>= ~24 MiB on v7x's 64 MiB; ~48 MiB on v5e/v6e's 128 MiB).
        stream_weights = weight_bytes > (vmem_device * 3) // 8

    cost = pl.CostEstimate(
        flops=4 * B * H * H,                            # two (B,H)x(H,H) matmuls
        transcendentals=2 * B,                          # one rsqrt per LayerNorm row
        bytes_accessed=B * H * (bytes_in + bytes_out) + weight_bytes + 8 * H * 4,
    )

    row_in_spec = pl.BlockSpec((tb, H), lambda i: (i, 0))
    row_out_spec = pl.BlockSpec((tb, H), lambda i: (i, 0))
    compiler_kwargs = dict(dimension_semantics=("parallel",))

    if not stream_weights:
        if _single_buffer_supported():
            # Constant index_map -> loaded once; Buffered(1) drops the never-used
            # second buffer, halving the weights' resident VMEM footprint.
            mat_spec = pl.BlockSpec((H, H), lambda i: (0, 0),
                                    pipeline_mode=pl.Buffered(1))
            par_spec = pl.BlockSpec((8, H), lambda i: (0, 0),
                                    pipeline_mode=pl.Buffered(1))
            n_buf = 1
        else:
            mat_spec = pl.BlockSpec((H, H), lambda i: (0, 0))
            par_spec = pl.BlockSpec((8, H), lambda i: (0, 0))
            n_buf = 2
        est = (2 * tb * H * (bytes_in + bytes_out)      # double-buffered x / out tiles
               + n_buf * weight_bytes                   # resident bf16 weights
               + n_buf * 8 * H * 4)                     # packed bias/LN rows
        vmem_limit = min(vmem_device - headroom,
                         max(32 << 20, int(1.25 * est) + (4 << 20)))
        return pl.pallas_call(
            _resident_kernel,
            out_shape=jax.ShapeDtypeStruct((B, H), out_dtype),
            grid_spec=pltpu.PrefetchScalarGridSpec(
                num_scalar_prefetch=0,
                grid=grid,
                in_specs=[row_in_spec, mat_spec, mat_spec, par_spec],
                out_specs=row_out_spec,
            ),
            compiler_params=pltpu.CompilerParams(vmem_limit_bytes=vmem_limit,
                                                 **compiler_kwargs),
            cost_estimate=cost,
        )(x, w1, w2, packed)

    # ---- weight-streaming path: w1/w2 stay in HBM; (tk,H) K-tiles are -------
    # ---- manually double-buffered into VMEM (for H too large for v7x VMEM) --
    if tk is None:
        for cand in (512, 256, 128):
            if H % cand == 0:
                tk = cand
                break
        else:
            raise ValueError(f"streaming path needs H ({H}) divisible by 128; pad H")
    if H % tk != 0 or tk % 8 != 0:
        raise ValueError(f"tk={tk} must divide H={H} and be a multiple of 8")

    est = (2 * tb * H * (bytes_in + bytes_out)          # double-buffered x / out tiles
           + 2 * tk * H * 2                             # weight K-tile double buffer
           + tb * H * 2                                 # bf16 lhs staging
           + tb * H * 4                                 # f32 accumulator
           + 2 * 8 * H * 4)                             # packed bias/LN rows
    vmem_limit = min(vmem_device - headroom,
                     max(32 << 20, int(1.25 * est) + (4 << 20)))

    return pl.pallas_call(
        _stream_kernel,
        out_shape=jax.ShapeDtypeStruct((B, H), out_dtype),
        grid_spec=pltpu.PrefetchScalarGridSpec(
            num_scalar_prefetch=0,
            grid=grid,
            in_specs=[row_in_spec,
                      pl.BlockSpec(memory_space=pl.ANY),    # w1 stays in HBM
                      pl.BlockSpec(memory_space=pl.ANY),    # w2 stays in HBM
                      pl.BlockSpec((8, H), lambda i: (0, 0))],
            out_specs=row_out_spec,
            scratch_shapes=[
                pltpu.VMEM((2, tk, H), jnp.bfloat16),        # weight K-tile double buffer
                pltpu.SemaphoreType.DMA((2,)),
                pltpu.VMEM((tb, H), jnp.bfloat16),           # bf16 lhs staging
                pltpu.VMEM((tb, H), jnp.float32),            # f32 accumulator
            ],
        ),
        compiler_params=pltpu.CompilerParams(vmem_limit_bytes=vmem_limit,
                                             **compiler_kwargs),
        cost_estimate=cost,
    )(x, w1, w2, packed)


# -----------------------------------------------------------------------------
# Parameter construction + pure-JAX reference.
# -----------------------------------------------------------------------------
def init_params(key, hidden_dim):
    """nn.Linear default init (U(-1/sqrt(fan_in), +)), LayerNorm ones/zeros.

    Returns kernel-ready params: weights pre-transposed to (in, out) and cast to
    bf16; the six (H,) bias/LN vectors packed into one (8, H) f32 block."""
    k1, k2, k3, k4 = jax.random.split(key, 4)
    bound = 1.0 / jnp.sqrt(hidden_dim)
    w1 = jax.random.uniform(k1, (hidden_dim, hidden_dim), jnp.float32, -bound, bound)
    b1 = jax.random.uniform(k2, (hidden_dim,), jnp.float32, -bound, bound)
    w2 = jax.random.uniform(k3, (hidden_dim, hidden_dim), jnp.float32, -bound, bound)
    b2 = jax.random.uniform(k4, (hidden_dim,), jnp.float32, -bound, bound)
    g1 = jnp.ones((hidden_dim,), jnp.float32)
    be1 = jnp.zeros((hidden_dim,), jnp.float32)
    g2 = jnp.ones((hidden_dim,), jnp.float32)
    be2 = jnp.zeros((hidden_dim,), jnp.float32)

    packed = jnp.zeros((8, hidden_dim), jnp.float32)
    packed = packed.at[_B1].set(b1).at[_G1].set(g1).at[_BE1].set(be1)
    packed = packed.at[_B2].set(b2).at[_G2].set(g2).at[_BE2].set(be2)
    return (w1.T.astype(jnp.bfloat16), w2.T.astype(jnp.bfloat16), packed)


def residual_block_ref(x, params):
    """Pure-JAX reference matching the kernel numerics (bf16 matmul, f32 LN)."""
    w1, w2, p = params
    b1, g1, be1, b2, g2, be2 = _unpack_params(p)
    x_f32 = x.astype(jnp.float32)
    h = jnp.dot(x.astype(jnp.bfloat16), w1, preferred_element_type=jnp.float32) + b1
    h = jnp.maximum(_layernorm(h, g1, be1), 0.0)
    h = jnp.dot(h.astype(jnp.bfloat16), w2, preferred_element_type=jnp.float32) + b2
    h = _layernorm(h, g2, be2)
    return jnp.maximum(h + x_f32, 0.0).astype(x.dtype)


if __name__ == "__main__":
    key = jax.random.PRNGKey(0)
    k1, k2, k3, k4, k5, k6 = jax.random.split(key, 6)

    # Case 1: module-faithful tiny smoke test (full-array block, grid=1).
    B1, H1 = 2, 32
    x1 = jax.random.normal(k1, (B1, H1), jnp.float32)
    p1 = init_params(k2, H1)
    out1 = jax.block_until_ready(residual_block(x1, p1))
    ref1 = residual_block_ref(x1, p1)
    assert out1.shape == (B1, H1) and out1.dtype == jnp.float32
    assert jnp.allclose(out1, ref1, atol=1e-2, rtol=1e-2), float(jnp.max(jnp.abs(out1 - ref1)))

    # Case 2: batch-tiled pipelined grid (default tb -> 128, 4 grid steps).
    B2, H2 = 512, 128
    x2 = jax.random.normal(k3, (B2, H2), jnp.float32)
    p2 = init_params(k4, H2)
    out2 = jax.block_until_ready(residual_block(x2, p2))
    ref2 = residual_block_ref(x2, p2)
    assert out2.shape == (B2, H2) and out2.dtype == jnp.float32
    assert jnp.allclose(out2, ref2, atol=1e-2, rtol=1e-2), float(jnp.max(jnp.abs(out2 - ref2)))

    # Case 3: bf16 activation I/O (halves HBM traffic in the memory-bound regime).
    x3 = x2.astype(jnp.bfloat16)
    out3 = jax.block_until_ready(residual_block(x3, p2, tb=128))
    ref3 = residual_block_ref(x3, p2)
    assert out3.shape == (B2, H2) and out3.dtype == jnp.bfloat16
    assert jnp.allclose(out3.astype(jnp.float32), ref3.astype(jnp.float32),
                        atol=5e-2, rtol=5e-2)

    # Case 4: force the HBM weight-streaming path (used automatically when the
    # bf16 weight pair would not fit comfortably in VMEM, e.g. H >= ~2048 on v7x).
    B4, H4 = 128, 256
    x4 = jax.random.normal(k5, (B4, H4), jnp.float32)
    p4 = init_params(k6, H4)
    out4 = jax.block_until_ready(residual_block(x4, p4, stream_weights=True, tk=128))
    ref4 = residual_block_ref(x4, p4)
    assert out4.shape == (B4, H4)
    assert jnp.allclose(out4, ref4, atol=1e-2, rtol=1e-2), float(jnp.max(jnp.abs(out4 - ref4)))

    print("KERNEL_OK")
</pallas_src>

<mosaic_0001>
module attributes {stable_mosaic.version = 11 : i64} {
  func.func @_resident_kernel(%arg0: i32, %arg1: memref<2x32xf32, #tpu.memory_space<vmem>>, %arg2: memref<32x32xbf16, #tpu.memory_space<vmem>>, %arg3: memref<32x32xbf16, #tpu.memory_space<vmem>>, %arg4: memref<8x32xf32, #tpu.memory_space<vmem>>, %arg5: memref<2x32xf32, #tpu.memory_space<vmem>>) attributes {dimension_semantics = [#tpu.dimension_semantics<parallel>], iteration_bounds = array<i64: 1>, scalar_prefetch = 0 : i64, scratch_operands = 0 : i64, tpu.core_type = #tpu.core_type<tc>, window_params = [{transform_indices = @transform_0, window_bounds = array<i64: 2, 32>}, {pipeline_mode = #tpu.pipeline_mode<synchronous>, transform_indices = @transform_1, window_bounds = array<i64: 32, 32>}, {pipeline_mode = #tpu.pipeline_mode<synchronous>, transform_indices = @transform_2, window_bounds = array<i64: 32, 32>}, {pipeline_mode = #tpu.pipeline_mode<synchronous>, transform_indices = @transform_3, window_bounds = array<i64: 8, 32>}, {transform_indices = @transform_4, window_bounds = array<i64: 2, 32>}]} {
    %c0 = arith.constant 0 : index
    %c0_0 = arith.constant 0 : index
    %0 = vector.load %arg1[%c0, %c0_0] : memref<2x32xf32, #tpu.memory_space<vmem>>, vector<2x32xf32>
    %1 = arith.truncf %0 : vector<2x32xf32> to vector<2x32xbf16>
    %c0_1 = arith.constant 0 : index
    %c0_2 = arith.constant 0 : index
    %2 = vector.load %arg4[%c0_1, %c0_2] : memref<8x32xf32, #tpu.memory_space<vmem>>, vector<8x32xf32>
    %3 = vector.extract_strided_slice %2 {offsets = [0, 0], sizes = [1, 32], strides = [1, 1]} : vector<8x32xf32> to vector<1x32xf32>
    %4 = vector.extract_strided_slice %2 {offsets = [1, 0], sizes = [1, 32], strides = [1, 1]} : vector<8x32xf32> to vector<1x32xf32>
    %5 = vector.extract_strided_slice %2 {offsets = [2, 0], sizes = [1, 32], strides = [1, 1]} : vector<8x32xf32> to vector<1x32xf32>
    %6 = vector.extract_strided_slice %2 {offsets = [3, 0], sizes = [1, 32], strides = [1, 1]} : vector<8x32xf32> to vector<1x32xf32>
    %7 = vector.extract_strided_slice %2 {offsets = [4, 0], sizes = [1, 32], strides = [1, 1]} : vector<8x32xf32> to vector<1x32xf32>
    %8 = vector.extract_strided_slice %2 {offsets = [5, 0], sizes = [1, 32], strides = [1, 1]} : vector<8x32xf32> to vector<1x32xf32>
    %c0_3 = arith.constant 0 : index
    %c0_4 = arith.constant 0 : index
    %9 = vector.load %arg2[%c0_3, %c0_4] : memref<32x32xbf16, #tpu.memory_space<vmem>>, vector<32x32xbf16>
    %cst = arith.constant dense<0.000000e+00> : vector<2x32xf32>
    %10 = tpu.matmul %1, %9, %cst {dimension_numbers = #tpu.dot_dimension_numbers<[1], [0], [0], [1], [0, 0, 1, 1], [], []>} : vector<2x32xbf16>, vector<32x32xbf16>, vector<2x32xf32> -> vector<2x32xf32>
    %11 = vector.broadcast %3 : vector<1x32xf32> to vector<2x32xf32>
    %12 = arith.addf %10, %11 : vector<2x32xf32>
    %cst_5 = arith.constant dense<0.000000e+00> : vector<2xf32>
    %13 = vector.multi_reduction <add>, %12, %cst_5 [1] : vector<2x32xf32> to vector<2xf32>
    %14 = vector.shape_cast %13 : vector<2xf32> to vector<2x1xf32>
    %cst_6 = arith.constant 3.200000e+01 : f32
    %15 = vector.broadcast %cst_6 : f32 to vector<2x1xf32>
    %16 = arith.divf %14, %15 : vector<2x1xf32>
    %17 = vector.broadcast %16 : vector<2x1xf32> to vector<2x32xf32>
    %18 = arith.subf %12, %17 : vector<2x32xf32>
    %19 = arith.mulf %18, %18 : vector<2x32xf32>
    %cst_7 = arith.constant dense<0.000000e+00> : vector<2xf32>
    %20 = vector.multi_reduction <add>, %19, %cst_7 [1] : vector<2x32xf32> to vector<2xf32>
    %21 = vector.shape_cast %20 : vector<2xf32> to vector<2x1xf32>
    %cst_8 = arith.constant 3.200000e+01 : f32
    %22 = vector.broadcast %cst_8 : f32 to vector<2x1xf32>
    %23 = arith.divf %21, %22 : vector<2x1xf32>
    %cst_9 = arith.constant 9.99999974E-6 : f32
    %24 = vector.broadcast %cst_9 : f32 to vector<2x1xf32>
    %25 = arith.addf %23, %24 : vector<2x1xf32>
    %26 = math.rsqrt %25 : vector<2x1xf32>
    %27 = vector.broadcast %26 : vector<2x1xf32> to vector<2x32xf32>
    %28 = arith.mulf %18, %27 : vector<2x32xf32>
    %29 = vector.broadcast %4 : vector<1x32xf32> to vector<2x32xf32>
    %30 = arith.mulf %28, %29 : vector<2x32xf32>
    %31 = vector.broadcast %5 : vector<1x32xf32> to vector<2x32xf32>
    %32 = arith.addf %30, %31 : vector<2x32xf32>
    %cst_10 = arith.constant 0.000000e+00 : f32
    %33 = vector.broadcast %cst_10 : f32 to vector<2x32xf32>
    %34 = arith.maximumf %32, %33 : vector<2x32xf32>
    %35 = arith.truncf %34 : vector<2x32xf32> to vector<2x32xbf16>
    %c0_11 = arith.constant 0 : index
    %c0_12 = arith.constant 0 : index
    %36 = vector.load %arg3[%c0_11, %c0_12] : memref<32x32xbf16, #tpu.memory_space<vmem>>, vector<32x32xbf16>
    %cst_13 = arith.constant dense<0.000000e+00> : vector<2x32xf32>
    %37 = tpu.matmul %35, %36, %cst_13 {dimension_numbers = #tpu.dot_dimension_numbers<[1], [0], [0], [1], [0, 0, 1, 1], [], []>} : vector<2x32xbf16>, vector<32x32xbf16>, vector<2x32xf32> -> vector<2x32xf32>
    %38 = vector.broadcast %6 : vector<1x32xf32> to vector<2x32xf32>
    %39 = arith.addf %37, %38 : vector<2x32xf32>
    %cst_14 = arith.constant dense<0.000000e+00> : vector<2xf32>
    %40 = vector.multi_reduction <add>, %39, %cst_14 [1] : vector<2x32xf32> to vector<2xf32>
    %41 = vector.shape_cast %40 : vector<2xf32> to vector<2x1xf32>
    %cst_15 = arith.constant 3.200000e+01 : f32
    %42 = vector.broadcast %cst_15 : f32 to vector<2x1xf32>
    %43 = arith.divf %41, %42 : vector<2x1xf32>
    %44 = vector.broadcast %43 : vector<2x1xf32> to vector<2x32xf32>
    %45 = arith.subf %39, %44 : vector<2x32xf32>
    %46 = arith.mulf %45, %45 : vector<2x32xf32>
    %cst_16 = arith.constant dense<0.000000e+00> : vector<2xf32>
    %47 = vector.multi_reduction <add>, %46, %cst_16 [1] : vector<2x32xf32> to vector<2xf32>
    %48 = vector.shape_cast %47 : vector<2xf32> to vector<2x1xf32>
    %cst_17 = arith.constant 3.200000e+01 : f32
    %49 = vector.broadcast %cst_17 : f32 to vector<2x1xf32>
    %50 = arith.divf %48, %49 : vector<2x1xf32>
    %cst_18 = arith.constant 9.99999974E-6 : f32
    %51 = vector.broadcast %cst_18 : f32 to vector<2x1xf32>
    %52 = arith.addf %50, %51 : vector<2x1xf32>
    %53 = math.rsqrt %52 : vector<2x1xf32>
    %54 = vector.broadcast %53 : vector<2x1xf32> to vector<2x32xf32>
    %55 = arith.mulf %45, %54 : vector<2x32xf32>
    %56 = vector.broadcast %7 : vector<1x32xf32> to vector<2x32xf32>
    %57 = arith.mulf %55, %56 : vector<2x32xf32>
    %58 = vector.broadcast %8 : vector<1x32xf32> to vector<2x32xf32>
    %59 = arith.addf %57, %58 : vector<2x32xf32>
    %60 = arith.addf %59, %0 : vector<2x32xf32>
    %cst_19 = arith.constant 0.000000e+00 : f32
    %61 = vector.broadcast %cst_19 : f32 to vector<2x32xf32>
    %62 = arith.maximumf %60, %61 : vector<2x32xf32>
    %c0_20 = arith.constant 0 : index
    %c0_21 = arith.constant 0 : index
    %63 = vector.load %arg5[%c0_20, %c0_21] : memref<2x32xf32, #tpu.memory_space<vmem>>, vector<2x32xf32>
    tpu.vector_store %arg5[%c0_20, %c0_21], %62 {strides = array<i32>} : memref<2x32xf32, #tpu.memory_space<vmem>>, vector<2x32xf32>,
    return
  }
  func.func @transform_0(%arg0: i32) -> (i32, i32) {
    %c0_i32 = arith.constant 0 : i32
    %c0_i32_0 = arith.constant 0 : i32
    return %arg0, %c0_i32 : i32, i32
  }
  func.func @transform_1(%arg0: i32) -> (i32, i32) {
    %c0_i32 = arith.constant 0 : i32
    %c0_i32_0 = arith.constant 0 : i32
    %c0_i32_1 = arith.constant 0 : i32
    return %c0_i32, %c0_i32_0 : i32, i32
  }
  func.func @transform_2(%arg0: i32) -> (i32, i32) {
    %c0_i32 = arith.constant 0 : i32
    %c0_i32_0 = arith.constant 0 : i32
    %c0_i32_1 = arith.constant 0 : i32
    return %c0_i32, %c0_i32_0 : i32, i32
  }
  func.func @transform_3(%arg0: i32) -> (i32, i32) {
    %c0_i32 = arith.constant 0 : i32
    %c0_i32_0 = arith.constant 0 : i32
    %c0_i32_1 = arith.constant 0 : i32
    return %c0_i32, %c0_i32_0 : i32, i32
  }
  func.func @transform_4(%arg0: i32) -> (i32, i32) {
    %c0_i32 = arith.constant 0 : i32
    %c0_i32_0 = arith.constant 0 : i32
    return %arg0, %c0_i32 : i32, i32
  }
}

</mosaic_0001>

<llo_original>
// kernel: tpu_custom_call.1
$region0: #{tpu_custom_call.1}
  #allocation0 [shape = 'u32[]', space=smem, size = 0x4, offset = 0x4, fixed_abs, tag = 'smem constant byte address 0x4 - core index']
  #allocation1 [shape = 'u32[144,128]{1,0:T(1,128)}', space=vmem, size = 0x12000, scoped, tag = 'internal scratch']
  %s0 = inlined_call_operand.hbm [shape: f32[2,32], index: 0, kind: input, shape index: {}]
  %s1 = inlined_call_operand.hbm [shape: bf16[32,32], index: 1, kind: input, shape index: {}]
  %s2 = inlined_call_operand.hbm [shape: bf16[32,32], index: 2, kind: input, shape index: {}]
  %s3 = inlined_call_operand.vmem [shape: f32[8,32], index: 3, kind: input, shape index: {}]
  %s4 = inlined_call_operand.hbm [shape: f32[2,32], index: 4, kind: output, shape index: {}]
  %s5 = sld [smem:[#allocation0]]
  $region38: #{tpu_custom_call.1} parent=0
    _
  %s7 = ssub.s32 1, %s5
  %s8 = scalar_select 0, %s7, %s5
  $region1: #{tpu_custom_call.1} parent=0
    #allocation2 [shape = 'u8[1024]{0}', space=vmem, size = 0x400, scoped, tag = 'input window, operand 0, single buffered']
    #allocation3 [shape = 's32[1]{0}', space=sflag, size = 0x4, scoped, tag = 'scoped memory for tpu_custom_call.1']
    #allocation4 [shape = 's32[1]{0}', space=sflag, size = 0x4, scoped, tag = 'scoped memory for tpu_custom_call.1']
    #allocation5 [shape = 'u8[8192]{0}', space=vmem, size = 0x2000, scoped, tag = 'input window, operand 1, single buffered']
    #allocation6 [shape = 's32[1]{0}', space=sflag, size = 0x4, scoped, tag = 'scoped memory for tpu_custom_call.1']
    #allocation7 [shape = 'u8[8192]{0}', space=vmem, size = 0x2000, scoped, tag = 'input window, operand 2, single buffered']
    #allocation8 [shape = 'u8[1024]{0}', space=vmem, size = 0x400, scoped, tag = 'output window, operand 0, single buffered']
    %9 = vsyncpa [#allocation3], 0
    %10 = vsyncpa [#allocation6], 0
    %11 = vsyncpa [#allocation4], 0
    // Predicated region
    $region2: #{tpu_custom_call.1} parent=1 // pred_check
      _
    $region3: #{tpu_custom_call.1} parent=1 // pred_check_branch
      %13 = sbr.rel (0) target = $region5
    $region4: #{tpu_custom_call.1} parent=1 // pred_region
      %s15 = ssub.s32 32, 32
      %16 = vsyncadd [#allocation3], %s15
      %s18 = sshll.u32 [#allocation2], 4
      %s19 = int_to_ptr.vmem [resolvable:$true] %s18
      %21 = dma.hbm_to_vmem [thread:$0]  %s0, 32, %s19, [#allocation3]
    $region5: #{tpu_custom_call.1} parent=1 // pred_fallthru
      _
    // Predicated region
    $region6: #{tpu_custom_call.1} parent=1 // pred_check
      _
    $region7: #{tpu_custom_call.1} parent=1 // pred_check_branch
      %23 = sbr.rel (0) target = $region9
    $region8: #{tpu_custom_call.1} parent=1 // pred_region
      %s25 = ssub.s32 256, 256
      %26 = vsyncadd [#allocation6], %s25
      %s27 = sshll.u32 [#allocation5], 4
      %s28 = int_to_ptr.vmem [resolvable:$true] %s27
      %33 = dma.hbm_to_vmem [thread:$0]  %s1, 256, %s28, [#allocation6], 64, 64, 4
    $region9: #{tpu_custom_call.1} parent=1 // pred_fallthru
      _
    // Predicated region
    $region10: #{tpu_custom_call.1} parent=1 // pred_check
      _
    $region11: #{tpu_custom_call.1} parent=1 // pred_check_branch
      %35 = sbr.rel (0) target = $region13
    $region12: #{tpu_custom_call.1} parent=1 // pred_region
      %s37 = ssub.s32 256, 256
      %38 = vsyncadd [#allocation6], %s37
      %s39 = sshll.u32 [#allocation7], 4
      %s40 = int_to_ptr.vmem [resolvable:$true] %s39
      %45 = dma.hbm_to_vmem [thread:$0]  %s2, 256, %s40, [#allocation6], 64, 64, 4
    $region13: #{tpu_custom_call.1} parent=1 // pred_fallthru
      _
    // Predicated region
    $region14: #{tpu_custom_call.1} parent=1 // pred_check
      _
    $region15: #{tpu_custom_call.1} parent=1 // pred_check_branch
      %47 = sbr.rel (0) target = $region17
    $region16: #{tpu_custom_call.1} parent=1 // pred_region
      _
    $region17: #{tpu_custom_call.1} parent=1 // pred_fallthru
      _
    // Predicated region
    $region18: #{tpu_custom_call.1} parent=1 // pred_check
      _
    $region19: #{tpu_custom_call.1} parent=1 // pred_check_branch
      %49 = sbr.rel (0) target = $region21
    $region20: #{tpu_custom_call.1} parent=1 // pred_region
      %50 = dma.done [#allocation3], 32
    $region21: #{tpu_custom_call.1} parent=1 // pred_fallthru
      _
    // Predicated region
    $region22: #{tpu_custom_call.1} parent=1 // pred_check
      _
    $region23: #{tpu_custom_call.1} parent=1 // pred_check_branch
      %52 = sbr.rel (0) target = $region25
    $region24: #{tpu_custom_call.1} parent=1 // pred_region
      %53 = dma.done [#allocation6], 256
    $region25: #{tpu_custom_call.1} parent=1 // pred_fallthru
      _
    // Predicated region
    $region26: #{tpu_custom_call.1} parent=1 // pred_check
      _
    $region27: #{tpu_custom_call.1} parent=1 // pred_check_branch
      %55 = sbr.rel (0) target = $region29
    $region28: #{tpu_custom_call.1} parent=1 // pred_region
      %56 = dma.done [#allocation6], 256
    $region29: #{tpu_custom_call.1} parent=1 // pred_fallthru
      _
    %v58 = vld [vmem:[#allocation2] sm:$0x3]
    %v59 = vpack.c.bf16 %v58, %v58
    %v60 = vld [vmem:[%s3] sm:$0xff]
    %v61 = vld [vmem:[#allocation5] sm:$0xf]
    %v62 = vld [vmem:[#allocation5 + $0x4] sm:$0xf]
    %v63 = vld [vmem:[#allocation5 + $0x8] sm:$0xf]
    %v64 = vld [vmem:[#allocation5 + $0xc] sm:$0xf]
    %v65 = vlaneseq
    %v66 = vshrl.u32 %v65, 7
    %v67 = vsub.s32 0, %v66
    %v68 = vrot.slane %v60, %v67
    %v73 = vunpack.c.l.b16 %v61
    %v74 = vunpack.c.l.b16 %v62
    %v75 = vunpack.c.l.b16 %v63
    %v76 = vunpack.c.l.b16 %v64
    %v77 = vpack.c.b16 %v74, %v73
    %v78 = vpack.c.b16 %v76, %v75
    %vm81 = vcmask 261120
    %v83 = vsel %vm81, %v59, 0
    %85 = vmatprep.subr.bf16.mxu0 0
    %86 = vmatpush1.bf16.msra.mxu0 %v77
    %87 = vmatprep.subr.bf16.mxu0 0
    %88 = vmatpush1.bf16.msra.mxu0 %v78
    %89 = vmatprep.subr.bf16.mxu0 0
    %90 = vmatpush1.bf16.msra.mxu0 0
    %91 = vmatprep.subr.bf16.mxu0 0
    %92 = vmatpush1.bf16.msra.mxu0 0
    %93 = vmatprep.subr.bf16.mxu0 0
    %94 = vmatpush1.bf16.msra.mxu0 0
    %95 = vmatprep.subr.bf16.mxu0 0
    %96 = vmatpush1.bf16.msra.mxu0 0
    %97 = vmatprep.subr.bf16.mxu0 0
    %98 = vmatpush1.bf16.msra.mxu0 0
    %99 = vmatprep.subr.bf16.mxu0 0
    %100 = vmatpush1.bf16.msra.mxu0 0
    %101 = vmatprep.subr.bf16.mxu0 0
    %102 = vmatpush1.bf16.msra.mxu0 0
    %103 = vmatprep.subr.bf16.mxu0 0
    %104 = vmatpush1.bf16.msra.mxu0 0
    %105 = vmatprep.subr.bf16.mxu0 0
    %106 = vmatpush1.bf16.msra.mxu0 0
    %107 = vmatprep.subr.bf16.mxu0 0
    %108 = vmatpush1.bf16.msra.mxu0 0
    %109 = vmatprep.subr.bf16.mxu0 0
    %110 = vmatpush1.bf16.msra.mxu0 0
    %111 = vmatprep.subr.bf16.mxu0 0
    %112 = vmatpush1.bf16.msra.mxu0 0
    %113 = vmatprep.subr.bf16.mxu0 0
    %114 = vmatpush1.bf16.msra.mxu0 0
    %115 = vmatprep.subr.bf16.mxu0 0
    %116 = vmatpush1.bf16.msra.mxu0 0
    %117 = vmatprep.mubr.bf16.mxu0 0
    %118 = vmatmul.mubr.bf16.gmra.mrb[0].mxu0 %v83
    %v119 = vpop.f32.mrb[0].mxu0
    %v120 = vadd.f32 %v68, %v119
    %v121 = vpop.f32.mrb[0].mxu0
    %v122 = vpop.f32.mrb[0].mxu0
    %v123 = vpop.f32.mrb[0].mxu0
    %124 = vdwg.mxu0
    %vm125 = vcmask 254976
    %v126 = vsel %vm125, %v120, 0.0
    %127 = vadd.xlane.f32.xlu0 %v126
    %v128 = vpop.xlane.xlu0 %127
    %v129 = vrcp.pop 32.0
    %v130 = vmul.f32 %v128, %v129
    %v131 = vsub.f32 %v120, %v130
    %v132 = vmul.f32 %v131, %v131
    %v133 = vsel %vm125, %v132, 0.0
    %134 = vadd.xlane.f32.xlu0 %v133
    %v135 = vpop.xlane.xlu0 %134
    %v136 = vmul.f32 %v135, %v129
    %v137 = vadd.f32 %v136, 1e-05
    %v138 = vrsqrt.pop %v137
    %v139 = vmul.f32 %v131, %v138
    %v140 = vlaneseq
    %v141 = vshrl.u32 %v140, 7
    %v142 = vsub.s32 1, %v141
    %v143 = vrot.slane %v60, %v142
    %v144 = vmul.f32 %v139, %v143
    %v145 = vlaneseq
    %v146 = vshrl.u32 %v145, 7
    %v147 = vsub.s32 2, %v146
    %v148 = vrot.slane %v60, %v147
    %v149 = vadd.f32 %v144, %v148
    %v150 = vmax.f32 %v149, 0.0
    %v151 = vpack.c.bf16 %v150, %v150
    %v152 = vld [vmem:[#allocation7] sm:$0xf]
    %v153 = vld [vmem:[#allocation7 + $0x4] sm:$0xf]
    %v154 = vld [vmem:[#allocation7 + $0x8] sm:$0xf]
    %v155 = vld [vmem:[#allocation7 + $0xc] sm:$0xf]
    %v156 = vlaneseq
    %v157 = vshrl.u32 %v156, 7
    %v158 = vsub.s32 3, %v157
    %v159 = vrot.slane %v60, %v158
    %v164 = vunpack.c.l.b16 %v152
    %v165 = vunpack.c.l.b16 %v153
    %v166 = vunpack.c.l.b16 %v154
    %v167 = vunpack.c.l.b16 %v155
    %v168 = vpack.c.b16 %v165, %v164
    %v169 = vpack.c.b16 %v167, %v166
    %v173 = vsel %vm81, %v151, 0
    %175 = vmatprep.subr.bf16.mxu0 0
    %176 = vmatpush1.bf16.msra.mxu0 %v168
    %177 = vmatprep.subr.bf16.mxu0 0
    %178 = vmatpush1.bf16.msra.mxu0 %v169
    %179 = vmatprep.subr.bf16.mxu0 0
    %180 = vmatpush1.bf16.msra.mxu0 0
    %181 = vmatprep.subr.bf16.mxu0 0
    %182 = vmatpush1.bf16.msra.mxu0 0
    %183 = vmatprep.subr.bf16.mxu0 0
    %184 = vmatpush1.bf16.msra.mxu0 0
    %185 = vmatprep.subr.bf16.mxu0 0
    %186 = vmatpush1.bf16.msra.mxu0 0
    %187 = vmatprep.subr.bf16.mxu0 0
    %188 = vmatpush1.bf16.msra.mxu0 0
    %189 = vmatprep.subr.bf16.mxu0 0
    %190 = vmatpush1.bf16.msra.mxu0 0
    %191 = vmatprep.subr.bf16.mxu0 0
    %192 = vmatpush1.bf16.msra.mxu0 0
    %193 = vmatprep.subr.bf16.mxu0 0
    %194 = vmatpush1.bf16.msra.mxu0 0
    %195 = vmatprep.subr.bf16.mxu0 0
    %196 = vmatpush1.bf16.msra.mxu0 0
    %197 = vmatprep.subr.bf16.mxu0 0
    %198 = vmatpush1.bf16.msra.mxu0 0
    %199 = vmatprep.subr.bf16.mxu0 0
    %200 = vmatpush1.bf16.msra.mxu0 0
    %201 = vmatprep.subr.bf16.mxu0 0
    %202 = vmatpush1.bf16.msra.mxu0 0
    %203 = vmatprep.subr.bf16.mxu0 0
    %204 = vmatpush1.bf16.msra.mxu0 0
    %205 = vmatprep.subr.bf16.mxu0 0
    %206 = vmatpush1.bf16.msra.mxu0 0
    %207 = vmatprep.mubr.bf16.mxu0 0
    %208 = vmatmul.mubr.bf16.gmra.mrb[0].mxu0 %v173
    %v209 = vpop.f32.mrb[0].mxu0
    %v210 = vadd.f32 %v159, %v209
    %v211 = vpop.f32.mrb[0].mxu0
    %v212 = vpop.f32.mrb[0].mxu0
    %v213 = vpop.f32.mrb[0].mxu0
    %214 = vdwg.mxu0
    %v215 = vsel %vm125, %v210, 0.0
    %216 = vadd.xlane.f32.xlu0 %v215
    %v217 = vpop.xlane.xlu0 %216
    %v218 = vmul.f32 %v217, %v129
    %v219 = vsub.f32 %v210, %v218
    %v220 = vmul.f32 %v219, %v219
    %v221 = vsel %vm125, %v220, 0.0
    %222 = vadd.xlane.f32.xlu0 %v221
    %v223 = vpop.xlane.xlu0 %222
    %v224 = vmul.f32 %v223, %v129
    %v225 = vadd.f32 %v224, 1e-05
    %v226 = vrsqrt.pop %v225
    %v227 = vmul.f32 %v219, %v226
    %v228 = vlaneseq
    %v229 = vshrl.u32 %v228, 7
    %v230 = vsub.s32 4, %v229
    %v231 = vrot.slane %v60, %v230
    %v232 = vmul.f32 %v227, %v231
    %v233 = vlaneseq
    %v234 = vshrl.u32 %v233, 7
    %v235 = vsub.s32 5, %v234
    %v236 = vrot.slane %v60, %v235
    %v237 = vadd.f32 %v232, %v236
    %v238 = vadd.f32 %v237, %v58
    %v239 = vmax.f32 %v238, 0.0
    %240 = vst.msk [vmem:[#allocation8] sm:$0x3] %vm125, %v239
    // Predicated region
    $region30: #{tpu_custom_call.1} parent=1 // pred_check
      _
    $region31: #{tpu_custom_call.1} parent=1 // pred_check_branch
      %242 = sbr.rel (0) target = $region33
    $region32: #{tpu_custom_call.1} parent=1 // pred_region
      %s244 = ssub.s32 32, 32
      %245 = vsyncadd [#allocation4], %s244
      %s247 = sshll.u32 [#allocation8], 4
      %s248 = int_to_ptr.vmem [resolvable:$true] %s247
      %250 = dma.vmem_to_hbm [thread:$0]  %s248, 32, %s4, [#allocation4]
    $region33: #{tpu_custom_call.1} parent=1 // pred_fallthru
      _
    // Predicated region
    $region34: #{tpu_custom_call.1} parent=1 // pred_check
      _
    $region35: #{tpu_custom_call.1} parent=1 // pred_check_branch
      %252 = sbr.rel (0) target = $region37
    $region36: #{tpu_custom_call.1} parent=1 // pred_region
      %253 = dma.done [#allocation4], 32
    $region37: #{tpu_custom_call.1} parent=1 // pred_fallthru
      _
    %254 = vsyncpa [#allocation3], 1
    %255 = vsyncpa [#allocation6], 1
    %256 = vsyncpa [#allocation4], 1

</llo_original>
